<compile_context>
chip_gen: v7x
topology: tpu7x:2x2x1
jax: 0.10.0
libtpu: 0.0.40
codegen_flags: <defaults>
</compile_context>

<pallas_src>
import functools

import numpy as np
import jax
import jax.numpy as jnp
from jax.experimental import pallas as pl
from jax.experimental.pallas import tpu as pltpu


# ---------------- Pallas kernel ----------------

def inner_product_decoder_kernel(z_row_ref, z_col_ref, out_ref, *, apply_sigmoid: bool):
    # z_row_ref: (TB, TN, D) tile of rows i   of z
    # z_col_ref: (TB, TN, D) tile of rows j   of z (the "columns" of z @ z^T)
    # out_ref:   (TB, TN, TN) output tile
    z_row = z_row_ref[...]
    z_col = z_col_ref[...]

    # Batched z_row @ z_col^T without materialising a transpose:
    # contract the latent (last) axis of both operands, batch over axis 0.
    # Inputs stay in their native dtype (bf16-native MXU path); accumulate f32.
    prod = jax.lax.dot_general(
        z_row, z_col,
        dimension_numbers=(((2,), (2,)), ((0,), (0,))),
        preferred_element_type=jnp.float32,
    )  # (TB, TN, TN), f32

    if apply_sigmoid:
        prod = jax.nn.sigmoid(prod)

    out_ref[...] = prod.astype(out_ref.dtype)


# ---------------- tile selection ----------------

def _pick_tiles(B, N, D, in_bytes, out_bytes, vmem_budget=32 << 20):
    """Pick (TB, TN) so double-buffered VMEM stays under `vmem_budget`."""
    # TN: lane-aligned tile of the N axis, or the full extent (which always
    # satisfies the BlockSpec (8,128) rule by equality).
    if N > 256 and N % 128 == 0:
        TN = 256
    else:
        TN = N

    def usage(tb):
        z_bufs = 2 * tb * TN * D * in_bytes     # row tile + col tile
        o_buf = tb * TN * TN * out_bytes        # output tile
        return 2 * (z_bufs + o_buf)             # double-buffered pipeline

    # Small graphs: big batch blocks amortise per-step overhead and give the
    # MXU larger batched tiles.  Large graphs: modest batch block, output tile
    # dominates VMEM anyway.
    tb = min(B, 256) if N < 128 else min(B, 8)
    tb = max(tb, 1)
    while tb > 1 and usage(tb) > vmem_budget:
        tb //= 2
    return tb, TN, usage(tb)


# ---------------- wrapper ----------------

def inner_product_decoder(z, *, sigmoid=True):
    """Pallas forward for InnerProductDecoder.

    z: (B, N, D) array. Returns (B, N, N) = sigmoid(z @ z^T) (or raw logits).
    """
    B, N, D = z.shape
    in_bytes = z.dtype.itemsize
    out_bytes = in_bytes

    TB, TN, vmem_use = _pick_tiles(B, N, D, in_bytes, out_bytes)

    grid = (pl.cdiv(B, TB), pl.cdiv(N, TN), pl.cdiv(N, TN))

    kernel = functools.partial(inner_product_decoder_kernel, apply_sigmoid=sigmoid)

    cost = pl.CostEstimate(
        flops=2 * B * N * N * D,
        transcendentals=B * N * N if sigmoid else 0,
        bytes_accessed=2 * B * N * D * in_bytes + B * N * N * out_bytes,
    )

    vmem_limit = int(min(64 << 20, max(32 << 20, int(1.5 * vmem_use))))

    return pl.pallas_call(
        kernel,
        out_shape=jax.ShapeDtypeStruct((B, N, N), z.dtype),
        grid=grid,
        in_specs=[
            pl.BlockSpec((TB, TN, D), lambda b, i, j: (b, i, 0)),  # row tile
            pl.BlockSpec((TB, TN, D), lambda b, i, j: (b, j, 0)),  # col tile
        ],
        out_specs=pl.BlockSpec((TB, TN, TN), lambda b, i, j: (b, i, j)),
        compiler_params=pltpu.CompilerParams(
            dimension_semantics=("parallel", "parallel", "parallel"),
            vmem_limit_bytes=vmem_limit,
        ),
        cost_estimate=cost,
    )(z, z)


# ---------------- pure-JAX reference ----------------

def reference_forward(z, *, sigmoid=True):
    prod = jnp.einsum("bij,bkj->bik", z, z)
    return jax.nn.sigmoid(prod) if sigmoid else prod


# ---------------- demo / correctness check ----------------

if __name__ == "__main__":
    key = jax.random.PRNGKey(0)

    # Small shapes matching the module's intended use (batch, graph, latent).
    batch, graph_size, latent_dim = 2, 8, 16
    z = jax.random.normal(key, (batch, graph_size, latent_dim), jnp.float32)

    out = jax.block_until_ready(inner_product_decoder(z, sigmoid=True))
    ref = reference_forward(z, sigmoid=True)
    assert out.shape == (batch, graph_size, graph_size), out.shape
    np.testing.assert_allclose(np.asarray(out), np.asarray(ref), rtol=1e-5, atol=1e-5)

    # sigmoid=False path (raw inner-product logits).
    out_raw = jax.block_until_ready(inner_product_decoder(z, sigmoid=False))
    np.testing.assert_allclose(
        np.asarray(out_raw), np.asarray(reference_forward(z, sigmoid=False)),
        rtol=1e-5, atol=1e-5)

    # Larger graph: exercises the lane-aligned N-tiling path (TN=256, padded
    # edge blocks).  Relaxed tolerance: MXU default precision for f32 inputs.
    key2 = jax.random.PRNGKey(1)
    z2 = jax.random.normal(key2, (3, 384, 64), jnp.float32)
    out2 = jax.block_until_ready(inner_product_decoder(z2, sigmoid=True))
    ref2 = reference_forward(z2, sigmoid=True)
    np.testing.assert_allclose(np.asarray(out2), np.asarray(ref2), rtol=2e-2, atol=2e-2)

    print("KERNEL_OK")
</pallas_src>

<mosaic_0001>
module attributes {stable_mosaic.version = 11 : i64} {
  func.func @inner_product_decoder_kernel(%arg0: i32, %arg1: i32, %arg2: i32, %arg3: memref<2x8x16xf32, #tpu.memory_space<vmem>>, %arg4: memref<2x8x16xf32, #tpu.memory_space<vmem>>, %arg5: memref<2x8x8xf32, #tpu.memory_space<vmem>>) attributes {dimension_semantics = [#tpu.dimension_semantics<parallel>, #tpu.dimension_semantics<parallel>, #tpu.dimension_semantics<parallel>], iteration_bounds = array<i64: 1, 1, 1>, scalar_prefetch = 0 : i64, scratch_operands = 0 : i64, tpu.core_type = #tpu.core_type<tc>, window_params = [{transform_indices = @transform_0, window_bounds = array<i64: 2, 8, 16>}, {transform_indices = @transform_1, window_bounds = array<i64: 2, 8, 16>}, {transform_indices = @transform_2, window_bounds = array<i64: 2, 8, 8>}]} {
    %c0 = arith.constant 0 : index
    %c0_0 = arith.constant 0 : index
    %c0_1 = arith.constant 0 : index
    %0 = vector.load %arg3[%c0, %c0_0, %c0_1] : memref<2x8x16xf32, #tpu.memory_space<vmem>>, vector<2x8x16xf32>
    %c0_2 = arith.constant 0 : index
    %c0_3 = arith.constant 0 : index
    %c0_4 = arith.constant 0 : index
    %1 = vector.load %arg4[%c0_2, %c0_3, %c0_4] : memref<2x8x16xf32, #tpu.memory_space<vmem>>, vector<2x8x16xf32>
    %cst = arith.constant dense<0.000000e+00> : vector<2x8x8xf32>
    %2 = tpu.matmul %0, %1, %cst {dimension_numbers = #tpu.dot_dimension_numbers<[2], [2], [1], [1], [0, 0, 0, 1, 1, 1], [0], [0]>} : vector<2x8x16xf32>, vector<2x8x16xf32>, vector<2x8x8xf32> -> vector<2x8x8xf32>
    %3 = arith.negf %2 : vector<2x8x8xf32>
    %4 = math.exp %3 : vector<2x8x8xf32>
    %cst_5 = arith.constant 1.000000e+00 : f32
    %5 = vector.broadcast %cst_5 : f32 to vector<2x8x8xf32>
    %6 = arith.addf %5, %4 : vector<2x8x8xf32>
    %7 = arith.divf %5, %6 : vector<2x8x8xf32>
    %c0_6 = arith.constant 0 : index
    %c0_7 = arith.constant 0 : index
    %c0_8 = arith.constant 0 : index
    %8 = vector.load %arg5[%c0_6, %c0_7, %c0_8] : memref<2x8x8xf32, #tpu.memory_space<vmem>>, vector<2x8x8xf32>
    tpu.vector_store %arg5[%c0_6, %c0_7, %c0_8], %7 {strides = array<i32>} : memref<2x8x8xf32, #tpu.memory_space<vmem>>, vector<2x8x8xf32>,
    return
  }
  func.func @transform_0(%arg0: i32, %arg1: i32, %arg2: i32) -> (i32, i32, i32) {
    %c0_i32 = arith.constant 0 : i32
    %c0_i32_0 = arith.constant 0 : i32
    return %arg0, %arg1, %c0_i32 : i32, i32, i32
  }
  func.func @transform_1(%arg0: i32, %arg1: i32, %arg2: i32) -> (i32, i32, i32) {
    %c0_i32 = arith.constant 0 : i32
    %c0_i32_0 = arith.constant 0 : i32
    return %arg0, %arg2, %c0_i32 : i32, i32, i32
  }
  func.func @transform_2(%arg0: i32, %arg1: i32, %arg2: i32) -> (i32, i32, i32) {
    %c0_i32 = arith.constant 0 : i32
    return %arg0, %arg1, %arg2 : i32, i32, i32
  }
}

</mosaic_0001>

<llo_original>
// kernel: tpu_custom_call.1
$region0: #{tpu_custom_call.1}
  #allocation0 [shape = 'u32[]', space=smem, size = 0x4, offset = 0x4, fixed_abs, tag = 'smem constant byte address 0x4 - core index']
  #allocation1 [shape = 'u32[144,128]{1,0:T(1,128)}', space=vmem, size = 0x12000, scoped, tag = 'internal scratch']
  %s0 = inlined_call_operand.hbm [shape: f32[2,8,16], index: 0, kind: input, shape index: {}]
  %s1 = inlined_call_operand.hbm [shape: f32[2,8,16], index: 1, kind: input, shape index: {}]
  %s2 = inlined_call_operand.hbm [shape: f32[2,8,8], index: 2, kind: output, shape index: {}]
  %s3 = sld [smem:[#allocation0]]
  $region26: #{tpu_custom_call.1} parent=0
    _
  %s5 = ssub.s32 1, %s3
  %s6 = scalar_select 0, %s5, %s3
  $region1: #{tpu_custom_call.1} parent=0
    #allocation2 [shape = 'u8[8192]{0}', space=vmem, size = 0x2000, scoped, tag = 'input window, operand 0, single buffered']
    #allocation3 [shape = 's32[1]{0}', space=sflag, size = 0x4, scoped, tag = 'scoped memory for tpu_custom_call.1']
    #allocation4 [shape = 's32[1]{0}', space=sflag, size = 0x4, scoped, tag = 'scoped memory for tpu_custom_call.1']
    #allocation5 [shape = 'u8[8192]{0}', space=vmem, size = 0x2000, scoped, tag = 'input window, operand 1, single buffered']
    #allocation6 [shape = 's32[1]{0}', space=sflag, size = 0x4, scoped, tag = 'scoped memory for tpu_custom_call.1']
    #allocation7 [shape = 'u8[8192]{0}', space=vmem, size = 0x2000, scoped, tag = 'output window, operand 0, single buffered']
    %7 = vsyncpa [#allocation3], 0
    %8 = vsyncpa [#allocation6], 0
    %9 = vsyncpa [#allocation4], 0
    // Predicated region
    $region2: #{tpu_custom_call.1} parent=1 // pred_check
      _
    $region3: #{tpu_custom_call.1} parent=1 // pred_check_branch
      %11 = sbr.rel (0) target = $region5
    $region4: #{tpu_custom_call.1} parent=1 // pred_region
      %s13 = ssub.s32 256, 256
      %14 = vsyncadd [#allocation3], %s13
      %s15 = sshll.u32 [#allocation2], 4
      %s16 = int_to_ptr.vmem [resolvable:$true] %s15
      %21 = dma.hbm_to_vmem [thread:$0]  %s0, 256, %s16, [#allocation3], 128, 128, 8
    $region5: #{tpu_custom_call.1} parent=1 // pred_fallthru
      _
    // Predicated region
    $region6: #{tpu_custom_call.1} parent=1 // pred_check
      _
    $region7: #{tpu_custom_call.1} parent=1 // pred_check_branch
      %23 = sbr.rel (0) target = $region9
    $region8: #{tpu_custom_call.1} parent=1 // pred_region
      %s25 = ssub.s32 256, 256
      %26 = vsyncadd [#allocation6], %s25
      %s27 = sshll.u32 [#allocation5], 4
      %s28 = int_to_ptr.vmem [resolvable:$true] %s27
      %33 = dma.hbm_to_vmem [thread:$0]  %s1, 256, %s28, [#allocation6], 128, 128, 8
    $region9: #{tpu_custom_call.1} parent=1 // pred_fallthru
      _
    // Predicated region
    $region10: #{tpu_custom_call.1} parent=1 // pred_check
      _
    $region11: #{tpu_custom_call.1} parent=1 // pred_check_branch
      %35 = sbr.rel (0) target = $region13
    $region12: #{tpu_custom_call.1} parent=1 // pred_region
      %36 = dma.done [#allocation3], 256
    $region13: #{tpu_custom_call.1} parent=1 // pred_fallthru
      _
    // Predicated region
    $region14: #{tpu_custom_call.1} parent=1 // pred_check
      _
    $region15: #{tpu_custom_call.1} parent=1 // pred_check_branch
      %38 = sbr.rel (0) target = $region17
    $region16: #{tpu_custom_call.1} parent=1 // pred_region
      %39 = dma.done [#allocation6], 256
    $region17: #{tpu_custom_call.1} parent=1 // pred_fallthru
      _
    %v40 = vld [vmem:[#allocation2] sm:$0xff]
    %v41 = vld [vmem:[#allocation2 + $0x8] sm:$0xff]
    %v42 = vld [vmem:[#allocation5] sm:$0xff]
    %v43 = vld [vmem:[#allocation5 + $0x8] sm:$0xff]
    %vm44 = vcmask 130048
    %v46 = vsel %vm44, %v40, 0
    %v49 = vsel %vm44, %v42, 0
    %51 = vmatprep.subr.mxu0 0.0
    %52 = vmatpush1.xpose.msra.mxu0 %v49
    %53 = vmatprep.subr.mxu0 0.0
    %54 = vmatpush1.xpose.msra.mxu0 0.0
    %55 = vmatprep.subr.mxu0 0.0
    %56 = vmatpush1.xpose.msra.mxu0 0.0
    %57 = vmatprep.subr.mxu0 0.0
    %58 = vmatpush1.xpose.msra.mxu0 0.0
    %59 = vmatprep.subr.mxu0 0.0
    %60 = vmatpush1.xpose.msra.mxu0 0.0
    %61 = vmatprep.subr.mxu0 0.0
    %62 = vmatpush1.xpose.msra.mxu0 0.0
    %63 = vmatprep.subr.mxu0 0.0
    %64 = vmatpush1.xpose.msra.mxu0 0.0
    %65 = vmatprep.subr.mxu0 0.0
    %66 = vmatpush1.xpose.msra.mxu0 0.0
    %67 = vmatprep.subr.mxu0 0.0
    %68 = vmatpush1.xpose.msra.mxu0 0.0
    %69 = vmatprep.subr.mxu0 0.0
    %70 = vmatpush1.xpose.msra.mxu0 0.0
    %71 = vmatprep.subr.mxu0 0.0
    %72 = vmatpush1.xpose.msra.mxu0 0.0
    %73 = vmatprep.subr.mxu0 0.0
    %74 = vmatpush1.xpose.msra.mxu0 0.0
    %75 = vmatprep.subr.mxu0 0.0
    %76 = vmatpush1.xpose.msra.mxu0 0.0
    %77 = vmatprep.subr.mxu0 0.0
    %78 = vmatpush1.xpose.msra.mxu0 0.0
    %79 = vmatprep.subr.mxu0 0.0
    %80 = vmatpush1.xpose.msra.mxu0 0.0
    %81 = vmatprep.subr.mxu0 0.0
    %82 = vmatpush1.xpose.msra.mxu0 0.0
    %83 = vmatprep.subr.mxu0 0.0
    %84 = vmatpush1.xpose.msra.mxu0 0.0
    %85 = vmatprep.subr.mxu0 0.0
    %86 = vmatpush1.xpose.msra.mxu0 0.0
    %87 = vmatprep.subr.mxu0 0.0
    %88 = vmatpush1.xpose.msra.mxu0 0.0
    %89 = vmatprep.subr.mxu0 0.0
    %90 = vmatpush1.xpose.msra.mxu0 0.0
    %91 = vmatprep.subr.mxu0 0.0
    %92 = vmatpush1.xpose.msra.mxu0 0.0
    %93 = vmatprep.subr.mxu0 0.0
    %94 = vmatpush1.xpose.msra.mxu0 0.0
    %95 = vmatprep.subr.mxu0 0.0
    %96 = vmatpush1.xpose.msra.mxu0 0.0
    %97 = vmatprep.subr.mxu0 0.0
    %98 = vmatpush1.xpose.msra.mxu0 0.0
    %99 = vmatprep.subr.mxu0 0.0
    %100 = vmatpush1.xpose.msra.mxu0 0.0
    %101 = vmatprep.subr.mxu0 0.0
    %102 = vmatpush1.xpose.msra.mxu0 0.0
    %103 = vmatprep.subr.mxu0 0.0
    %104 = vmatpush1.xpose.msra.mxu0 0.0
    %105 = vmatprep.subr.mxu0 0.0
    %106 = vmatpush1.xpose.msra.mxu0 0.0
    %107 = vmatprep.subr.mxu0 0.0
    %108 = vmatpush1.xpose.msra.mxu0 0.0
    %109 = vmatprep.subr.mxu0 0.0
    %110 = vmatpush1.xpose.msra.mxu0 0.0
    %111 = vmatprep.subr.mxu0 0.0
    %112 = vmatpush1.xpose.msra.mxu0 0.0
    %113 = vmatprep.subr.mxu0 0.0
    %114 = vmatpush1.xpose.msra.mxu0 0.0
    %115 = vmatprep.mubr.f32.mxu0 0.0
    %116 = vmatmul.mubr.f32.gmra.mrb[0].mxu0 %v46
    %v117 = vpop.f32.mrb[0].mxu0
    %v118 = vadd.f32 0.0, %v117
    %v119 = vpop.f32.mrb[0].mxu0
    %120 = vdwg.mxu0
    %v122 = vsel %vm44, %v41, 0
    %v125 = vsel %vm44, %v43, 0
    %127 = vmatprep.subr.mxu0 0.0
    %128 = vmatpush1.xpose.msra.mxu0 %v125
    %129 = vmatprep.subr.mxu0 0.0
    %130 = vmatpush1.xpose.msra.mxu0 0.0
    %131 = vmatprep.subr.mxu0 0.0
    %132 = vmatpush1.xpose.msra.mxu0 0.0
    %133 = vmatprep.subr.mxu0 0.0
    %134 = vmatpush1.xpose.msra.mxu0 0.0
    %135 = vmatprep.subr.mxu0 0.0
    %136 = vmatpush1.xpose.msra.mxu0 0.0
    %137 = vmatprep.subr.mxu0 0.0
    %138 = vmatpush1.xpose.msra.mxu0 0.0
    %139 = vmatprep.subr.mxu0 0.0
    %140 = vmatpush1.xpose.msra.mxu0 0.0
    %141 = vmatprep.subr.mxu0 0.0
    %142 = vmatpush1.xpose.msra.mxu0 0.0
    %143 = vmatprep.subr.mxu0 0.0
    %144 = vmatpush1.xpose.msra.mxu0 0.0
    %145 = vmatprep.subr.mxu0 0.0
    %146 = vmatpush1.xpose.msra.mxu0 0.0
    %147 = vmatprep.subr.mxu0 0.0
    %148 = vmatpush1.xpose.msra.mxu0 0.0
    %149 = vmatprep.subr.mxu0 0.0
    %150 = vmatpush1.xpose.msra.mxu0 0.0
    %151 = vmatprep.subr.mxu0 0.0
    %152 = vmatpush1.xpose.msra.mxu0 0.0
    %153 = vmatprep.subr.mxu0 0.0
    %154 = vmatpush1.xpose.msra.mxu0 0.0
    %155 = vmatprep.subr.mxu0 0.0
    %156 = vmatpush1.xpose.msra.mxu0 0.0
    %157 = vmatprep.subr.mxu0 0.0
    %158 = vmatpush1.xpose.msra.mxu0 0.0
    %159 = vmatprep.subr.mxu0 0.0
    %160 = vmatpush1.xpose.msra.mxu0 0.0
    %161 = vmatprep.subr.mxu0 0.0
    %162 = vmatpush1.xpose.msra.mxu0 0.0
    %163 = vmatprep.subr.mxu0 0.0
    %164 = vmatpush1.xpose.msra.mxu0 0.0
    %165 = vmatprep.subr.mxu0 0.0
    %166 = vmatpush1.xpose.msra.mxu0 0.0
    %167 = vmatprep.subr.mxu0 0.0
    %168 = vmatpush1.xpose.msra.mxu0 0.0
    %169 = vmatprep.subr.mxu0 0.0
    %170 = vmatpush1.xpose.msra.mxu0 0.0
    %171 = vmatprep.subr.mxu0 0.0
    %172 = vmatpush1.xpose.msra.mxu0 0.0
    %173 = vmatprep.subr.mxu0 0.0
    %174 = vmatpush1.xpose.msra.mxu0 0.0
    %175 = vmatprep.subr.mxu0 0.0
    %176 = vmatpush1.xpose.msra.mxu0 0.0
    %177 = vmatprep.subr.mxu0 0.0
    %178 = vmatpush1.xpose.msra.mxu0 0.0
    %179 = vmatprep.subr.mxu0 0.0
    %180 = vmatpush1.xpose.msra.mxu0 0.0
    %181 = vmatprep.subr.mxu0 0.0
    %182 = vmatpush1.xpose.msra.mxu0 0.0
    %183 = vmatprep.subr.mxu0 0.0
    %184 = vmatpush1.xpose.msra.mxu0 0.0
    %185 = vmatprep.subr.mxu0 0.0
    %186 = vmatpush1.xpose.msra.mxu0 0.0
    %187 = vmatprep.subr.mxu0 0.0
    %188 = vmatpush1.xpose.msra.mxu0 0.0
    %189 = vmatprep.subr.mxu0 0.0
    %190 = vmatpush1.xpose.msra.mxu0 0.0
    %191 = vmatprep.mubr.f32.mxu0 0.0
    %192 = vmatmul.mubr.f32.gmra.mrb[0].mxu0 %v122
    %v193 = vpop.f32.mrb[0].mxu0
    %v194 = vadd.f32 0.0, %v193
    %v195 = vpop.f32.mrb[0].mxu0
    %196 = vdwg.mxu0
    %v197 = vxor.u32 %v118, 2147483648
    %v198 = vxor.u32 %v194, 2147483648
    %v199 = vmul.f32 %v197, 1.442695
    %v200 = vpow.pop %v199
    %v201 = vmul.f32 %v198, 1.442695
    %v202 = vpow.pop %v201
    %v203 = vadd.f32 %v200, 1.0
    %v204 = vadd.f32 %v202, 1.0
    %v205 = vrcp.pop %v203
    %v206 = vmul.f32 1.0, %v205
    %v207 = vrcp.pop %v204
    %v208 = vmul.f32 1.0, %v207
    %vm209 = vcmask 64512
    %210 = vst.msk [vmem:[#allocation7] sm:$0xff] %vm209, %v206
    %211 = vst.msk [vmem:[#allocation7 + $0x8] sm:$0xff] %vm209, %v208
    // Predicated region
    $region18: #{tpu_custom_call.1} parent=1 // pred_check
      _
    $region19: #{tpu_custom_call.1} parent=1 // pred_check_branch
      %213 = sbr.rel (0) target = $region21
    $region20: #{tpu_custom_call.1} parent=1 // pred_region
      %s215 = ssub.s32 256, 256
      %216 = vsyncadd [#allocation4], %s215
      %s217 = sshll.u32 [#allocation7], 4
      %s218 = int_to_ptr.vmem [resolvable:$true] %s217
      %223 = dma.vmem_to_hbm [thread:$0]  %s218, 256, %s2, [#allocation4], 128, 128, 8
    $region21: #{tpu_custom_call.1} parent=1 // pred_fallthru
      _
    // Predicated region
    $region22: #{tpu_custom_call.1} parent=1 // pred_check
      _
    $region23: #{tpu_custom_call.1} parent=1 // pred_check_branch
      %225 = sbr.rel (0) target = $region25
    $region24: #{tpu_custom_call.1} parent=1 // pred_region
      %226 = dma.done [#allocation4], 256
    $region25: #{tpu_custom_call.1} parent=1 // pred_fallthru
      _
    %227 = vsyncpa [#allocation3], 1
    %228 = vsyncpa [#allocation6], 1
    %229 = vsyncpa [#allocation4], 1

</llo_original>
